<compile_context>
chip_gen: v6e
topology: v6e:2x2x1
jax: 0.10.0
libtpu: 0.0.40
codegen_flags: <defaults>
</compile_context>

<pallas_src>
import numpy as np
import jax
import jax.numpy as jnp
from jax.experimental import pallas as pl
from jax.experimental.pallas import tpu as pltpu


def make_positional_encoding(d_model: int, max_len: int = 5000,
                             dtype=jnp.float32) -> jnp.ndarray:
    """Deterministic sin/cos table, shape (max_len, 1, d_model).

    Build once at init in the model's activation dtype so the forward pass
    never pays a per-call slice/cast kernel.
    """
    position = np.arange(0, max_len, dtype=np.float32)[:, None]              # (L, 1)
    div_term = np.exp(
        np.arange(0, d_model, 2, dtype=np.float32) * (-np.log(10000.0) / d_model)
    )                                                                          # (D/2,)
    pe = np.zeros((max_len, d_model), dtype=np.float32)
    pe[:, 0::2] = np.sin(position * div_term)
    pe[:, 1::2] = np.cos(position * div_term)
    return jnp.asarray(pe[:, None, :], dtype=dtype)                            # (L, 1, D)


def _pe_add_kernel(x_ref, pe_ref, o_ref):
    # x_ref / o_ref: (ts, B, td); pe_ref: (ts, td) (size-1 batch dim squeezed).
    # Broadcast pe over the batch axis; store explicitly in the output dtype.
    o_ref[...] = (x_ref[...] + pe_ref[...][:, None, :]).astype(o_ref.dtype)


def _round_up(x: int, m: int) -> int:
    return -(-x // m) * m


def _tpu_budgets():
    """Generation-aware (block-byte target, vmem_limit_bytes, two_tensorcores)."""
    vmem_cap = 128 << 20
    try:
        info = pltpu.get_tpu_info()
        vmem_cap = int(getattr(info, "vmem_capacity_bytes", vmem_cap))
    except Exception:
        pass
    kind = ""
    try:
        kind = jax.devices()[0].device_kind.lower()
    except Exception:
        pass
    two_tc = any(t in kind for t in ("v7", "v4", "v5p"))
    if vmem_cap <= (64 << 20):
        # v7x-class: 64 MiB VMEM per TC, very fast HBM -> bigger blocks to
        # amortize the fixed per-grid-step overhead, tighter VMEM budget.
        target_block = 8 << 20
        vmem_limit = min(48 << 20, (vmem_cap * 3) // 4)
    else:
        # v5e / v6e: 128 MiB VMEM, ~4 MiB blocks hit the measured HBM-roofline knee.
        target_block = 4 << 20
        vmem_limit = 64 << 20
    return target_block, vmem_limit, two_tc


def _choose_tiles(S: int, B: int, D: int, dtype, target_block_bytes: int,
                  two_tc: bool):
    """Pick (seq_tile, d_tile) with a padding-aware VMEM estimate."""
    itemsize = jnp.dtype(dtype).itemsize
    sublanes = max(8, 32 // max(itemsize, 1))            # 8 f32, 16 bf16, 32 int8
    b_pad = _round_up(max(B, 1), sublanes)
    d_pad = _round_up(max(D, 1), 128)

    # Fallback: if one padded (1, B, D) row already exceeds the block target,
    # tile D in multiples of 128 (lane-dense) so large B*D shapes stay VMEM-safe.
    td = D
    row_bytes = b_pad * d_pad * itemsize
    if row_bytes > target_block_bytes and D > 128 and D % 128 == 0:
        td = (target_block_bytes // (b_pad * itemsize)) // 128 * 128
        td = int(min(max(td, 128), D))
        row_bytes = b_pad * td * itemsize

    ts = max(1, target_block_bytes // row_bytes)
    if two_tc and S >= 4:
        # >= 4 seq blocks (>= 2 per TensorCore) so each core keeps i+1 prefetch
        # / i-1 writeback overlap.  Single-TC parts skip this (no extra step).
        ts = min(ts, max(1, S // 4))
    ts = min(ts, S)
    if ts > sublanes:
        ts -= ts % sublanes                               # sublane-aligned full blocks
    return int(ts), int(td)


def positional_encoding_forward(x: jnp.ndarray, pe: jnp.ndarray,
                                *, donate_x: bool = False) -> jnp.ndarray:
    """x: (S, B, D); pe: (max_len, 1, D) cached in the model dtype. Returns x + pe[:S]."""
    S, B, D = x.shape
    assert pe.ndim == 3 and pe.shape[1] == 1 and pe.shape[2] == D and pe.shape[0] >= S
    if pe.dtype != x.dtype:
        # No-op when pe was cached in the model dtype at init (recommended).
        pe = pe.astype(x.dtype)

    target_block, vmem_limit, two_tc = _tpu_budgets()
    ts, td = _choose_tiles(S, B, D, x.dtype, target_block, two_tc)
    grid = (pl.cdiv(S, ts), pl.cdiv(D, td))

    # No pe[:S] slice and no per-call cast: the grid's index_map only touches
    # the first cdiv(S, ts) blocks of the full table.
    return pl.pallas_call(
        _pe_add_kernel,
        out_shape=jax.ShapeDtypeStruct((S, B, D), x.dtype),
        grid=grid,
        in_specs=[
            pl.BlockSpec((ts, B, td), lambda i, j: (i, 0, j)),
            # Squeeze pe's size-1 batch dim: dense (ts, td) tile, no 8x sublane waste.
            pl.BlockSpec((ts, pl.Squeezed(), td), lambda i, j: (i, 0, j)),
        ],
        out_specs=pl.BlockSpec((ts, B, td), lambda i, j: (i, 0, j)),
        compiler_params=pltpu.CompilerParams(
            dimension_semantics=("parallel", "parallel"),
            vmem_limit_bytes=vmem_limit,
        ),
        input_output_aliases=({0: 0} if donate_x else {}),
    )(x, pe)


if __name__ == "__main__":
    d_model = 32
    max_len = 64
    key = jax.random.PRNGKey(0)

    # f32 model: pe cached in f32 at "init" (matches the PyTorch buffer dtype).
    pe_f32 = make_positional_encoding(d_model, max_len, dtype=jnp.float32)

    # S divisible by the tile, and an odd S to exercise the partial trailing block.
    for (S, B) in [(8, 2), (7, 2)]:
        x = jax.random.normal(jax.random.fold_in(key, S), (S, B, d_model),
                              dtype=jnp.float32)
        out = jax.block_until_ready(positional_encoding_forward(x, pe_f32))
        ref = x + pe_f32[:S]
        assert out.shape == (S, B, d_model)
        np.testing.assert_allclose(np.asarray(out), np.asarray(ref),
                                   rtol=1e-6, atol=1e-6)

    # bf16 activations: pe cached once in bf16 at init.  Documented deviation:
    # the add stays in bf16 instead of PyTorch's implicit promote-to-f32.
    pe_bf16 = make_positional_encoding(d_model, max_len, dtype=jnp.bfloat16)
    S, B = 8, 2
    x16 = jax.random.normal(jax.random.fold_in(key, 99), (S, B, d_model),
                            dtype=jnp.bfloat16)
    out16 = jax.block_until_ready(positional_encoding_forward(x16, pe_bf16))
    ref16 = x16 + pe_bf16[:S]
    np.testing.assert_allclose(np.asarray(out16, dtype=np.float32),
                               np.asarray(ref16, dtype=np.float32),
                               rtol=1e-2, atol=1e-2)

    print("KERNEL_OK")
</pallas_src>

<mosaic_0001>
module attributes {stable_mosaic.version = 11 : i64} {
  func.func @_pe_add_kernel(%arg0: i32, %arg1: i32, %arg2: memref<8x2x32xf32, #tpu.memory_space<vmem>>, %arg3: memref<8x1x32xf32, #tpu.memory_space<vmem>>, %arg4: memref<8x2x32xf32, #tpu.memory_space<vmem>>) attributes {dimension_semantics = [#tpu.dimension_semantics<parallel>, #tpu.dimension_semantics<parallel>], iteration_bounds = array<i64: 1, 1>, scalar_prefetch = 0 : i64, scratch_operands = 0 : i64, tpu.core_type = #tpu.core_type<tc>, window_params = [{transform_indices = @transform_0, window_bounds = array<i64: 8, 2, 32>}, {transform_indices = @transform_1, window_bounds = array<i64: 8, 1, 32>}, {transform_indices = @transform_2, window_bounds = array<i64: 8, 2, 32>}]} {
    %c0 = arith.constant 0 : index
    %c0_0 = arith.constant 0 : index
    %c0_1 = arith.constant 0 : index
    %0 = vector.load %arg2[%c0, %c0_0, %c0_1] : memref<8x2x32xf32, #tpu.memory_space<vmem>>, vector<8x2x32xf32>
    %c0_2 = arith.constant 0 : index
    %c0_3 = arith.constant 0 : index
    %c0_4 = arith.constant 0 : index
    %1 = vector.load %arg3[%c0_2, %c0_3, %c0_4] : memref<8x1x32xf32, #tpu.memory_space<vmem>>, vector<8x1x32xf32>
    %2 = vector.shape_cast %1 : vector<8x1x32xf32> to vector<8x32xf32>
    %3 = vector.shape_cast %2 : vector<8x32xf32> to vector<8x1x32xf32>
    %4 = vector.broadcast %3 : vector<8x1x32xf32> to vector<8x2x32xf32>
    %5 = arith.addf %0, %4 : vector<8x2x32xf32>
    %c0_5 = arith.constant 0 : index
    %c0_6 = arith.constant 0 : index
    %c0_7 = arith.constant 0 : index
    %6 = vector.load %arg4[%c0_5, %c0_6, %c0_7] : memref<8x2x32xf32, #tpu.memory_space<vmem>>, vector<8x2x32xf32>
    tpu.vector_store %arg4[%c0_5, %c0_6, %c0_7], %5 {strides = array<i32>} : memref<8x2x32xf32, #tpu.memory_space<vmem>>, vector<8x2x32xf32>,
    return
  }
  func.func @transform_0(%arg0: i32, %arg1: i32) -> (i32, i32, i32) {
    %c0_i32 = arith.constant 0 : i32
    %c0_i32_0 = arith.constant 0 : i32
    return %arg0, %c0_i32, %arg1 : i32, i32, i32
  }
  func.func @transform_1(%arg0: i32, %arg1: i32) -> (i32, i32, i32) {
    %c0_i32 = arith.constant 0 : i32
    %c0_i32_0 = arith.constant 0 : i32
    return %arg0, %c0_i32, %arg1 : i32, i32, i32
  }
  func.func @transform_2(%arg0: i32, %arg1: i32) -> (i32, i32, i32) {
    %c0_i32 = arith.constant 0 : i32
    %c0_i32_0 = arith.constant 0 : i32
    return %arg0, %c0_i32, %arg1 : i32, i32, i32
  }
}

</mosaic_0001>

<llo_original>
// kernel: tpu_custom_call.1
$region0: #{tpu_custom_call.1}
  #allocation0 [shape = 'u32[]', space=smem, size = 0x4, offset = 0x4, fixed_abs, tag = 'smem constant byte address 0x4 - core index']
  #allocation1 [shape = 'u32[144,128]{1,0:T(1,128)}', space=vmem, size = 0x12000, scoped, tag = 'internal scratch']
  %s0 = inlined_call_operand.vmem [shape: f32[8,2,32], index: 0, kind: input, shape index: {}]
  %s1 = inlined_call_operand.vmem [shape: f32[64,1,32], index: 1, kind: input, shape index: {}]
  %s2 = inlined_call_operand.hbm [shape: f32[8,2,32], index: 2, kind: output, shape index: {}]
  %s3 = sld [smem:[#allocation0]]
  $region18: #{tpu_custom_call.1} parent=0
    _
  %s5 = ssub.s32 1, %s3
  %s6 = scalar_select 0, %s5, %s3
  $region1: #{tpu_custom_call.1} parent=0
    #allocation2 [shape = 'u8[8192]{0}', space=vmem, size = 0x2000, scoped, tag = 'output window, operand 0, single buffered']
    #allocation3 [shape = 's32[1]{0}', space=sflag, size = 0x4, scoped, tag = 'scoped memory for tpu_custom_call.1']
    %7 = vsyncpa [#allocation3], 0
    // Predicated region
    $region2: #{tpu_custom_call.1} parent=1 // pred_check
      _
    $region3: #{tpu_custom_call.1} parent=1 // pred_check_branch
      %9 = sbr.rel (0) target = $region5
    $region4: #{tpu_custom_call.1} parent=1 // pred_region
      _
    $region5: #{tpu_custom_call.1} parent=1 // pred_fallthru
      _
    // Predicated region
    $region6: #{tpu_custom_call.1} parent=1 // pred_check
      _
    $region7: #{tpu_custom_call.1} parent=1 // pred_check_branch
      %11 = sbr.rel (0) target = $region9
    $region8: #{tpu_custom_call.1} parent=1 // pred_region
      _
    $region9: #{tpu_custom_call.1} parent=1 // pred_fallthru
      _
    %v12 = vld [vmem:[%s0] sm:$0x3]
    %v13 = vld [vmem:[%s0 + $0x2] sm:$0x3]
    %v14 = vld [vmem:[%s0 + $0x4] sm:$0x3]
    %v15 = vld [vmem:[%s0 + $0x6] sm:$0x3]
    %v16 = vld [vmem:[%s0 + $0x8] sm:$0x3]
    %v17 = vld [vmem:[%s0 + $0xa] sm:$0x3]
    %v18 = vld [vmem:[%s0 + $0xc] sm:$0x3]
    %v19 = vld [vmem:[%s0 + $0xe] sm:$0x3]
    %v20 = vld [vmem:[%s1] sm:$0x1]
    %v21 = vld [vmem:[%s1 + $0x1] sm:$0x1]
    %v22 = vld [vmem:[%s1 + $0x2] sm:$0x1]
    %v23 = vld [vmem:[%s1 + $0x3] sm:$0x1]
    %v24 = vld [vmem:[%s1 + $0x4] sm:$0x1]
    %v25 = vld [vmem:[%s1 + $0x5] sm:$0x1]
    %v26 = vld [vmem:[%s1 + $0x6] sm:$0x1]
    %v27 = vld [vmem:[%s1 + $0x7] sm:$0x1]
    %v36 = vlaneseq
    %v37 = vshrl.u32 %v36, 7
    %v38 = vsub.s32 0, %v37
    %v39 = vrot.slane %v20, %v38
    %v40 = vlaneseq
    %v41 = vshrl.u32 %v40, 7
    %v42 = vsub.s32 0, %v41
    %v43 = vrot.slane %v21, %v42
    %v44 = vlaneseq
    %v45 = vshrl.u32 %v44, 7
    %v46 = vsub.s32 0, %v45
    %v47 = vrot.slane %v22, %v46
    %v48 = vlaneseq
    %v49 = vshrl.u32 %v48, 7
    %v50 = vsub.s32 0, %v49
    %v51 = vrot.slane %v23, %v50
    %v52 = vlaneseq
    %v53 = vshrl.u32 %v52, 7
    %v54 = vsub.s32 0, %v53
    %v55 = vrot.slane %v24, %v54
    %v56 = vlaneseq
    %v57 = vshrl.u32 %v56, 7
    %v58 = vsub.s32 0, %v57
    %v59 = vrot.slane %v25, %v58
    %v60 = vlaneseq
    %v61 = vshrl.u32 %v60, 7
    %v62 = vsub.s32 0, %v61
    %v63 = vrot.slane %v26, %v62
    %v64 = vlaneseq
    %v65 = vshrl.u32 %v64, 7
    %v66 = vsub.s32 0, %v65
    %v67 = vrot.slane %v27, %v66
    %v76 = vadd.f32 %v12, %v39
    %v77 = vadd.f32 %v13, %v43
    %v78 = vadd.f32 %v14, %v47
    %v79 = vadd.f32 %v15, %v51
    %v80 = vadd.f32 %v16, %v55
    %v81 = vadd.f32 %v17, %v59
    %v82 = vadd.f32 %v18, %v63
    %v83 = vadd.f32 %v19, %v67
    %vm84 = vcmask 254976
    %85 = vst.msk [vmem:[#allocation2] sm:$0x3] %vm84, %v76
    %86 = vst.msk [vmem:[#allocation2 + $0x2] sm:$0x3] %vm84, %v77
    %87 = vst.msk [vmem:[#allocation2 + $0x4] sm:$0x3] %vm84, %v78
    %88 = vst.msk [vmem:[#allocation2 + $0x6] sm:$0x3] %vm84, %v79
    %89 = vst.msk [vmem:[#allocation2 + $0x8] sm:$0x3] %vm84, %v80
    %90 = vst.msk [vmem:[#allocation2 + $0xa] sm:$0x3] %vm84, %v81
    %91 = vst.msk [vmem:[#allocation2 + $0xc] sm:$0x3] %vm84, %v82
    %92 = vst.msk [vmem:[#allocation2 + $0xe] sm:$0x3] %vm84, %v83
    // Predicated region
    $region10: #{tpu_custom_call.1} parent=1 // pred_check
      _
    $region11: #{tpu_custom_call.1} parent=1 // pred_check_branch
      %94 = sbr.rel (0) target = $region13
    $region12: #{tpu_custom_call.1} parent=1 // pred_region
      %s96 = ssub.s32 256, 256
      %97 = vsyncadd [#allocation3], %s96
      %s98 = sshll.u32 [#allocation2], 4
      %s99 = int_to_ptr.vmem [resolvable:$true] %s98
      %104 = dma.vmem_to_hbm [thread:$0]  %s99, 256, %s2, [#allocation3], 32, 32, 2
    $region13: #{tpu_custom_call.1} parent=1 // pred_fallthru
      _
    // Predicated region
    $region14: #{tpu_custom_call.1} parent=1 // pred_check
      _
    $region15: #{tpu_custom_call.1} parent=1 // pred_check_branch
      %106 = sbr.rel (0) target = $region17
    $region16: #{tpu_custom_call.1} parent=1 // pred_region
      %107 = dma.done [#allocation3], 256
    $region17: #{tpu_custom_call.1} parent=1 // pred_fallthru
      _
    %108 = vsyncpa [#allocation3], 1

</llo_original>
